<compile_context>
chip_gen: v7x
topology: tpu7x:2x2x1
jax: 0.10.0
libtpu: 0.0.40
codegen_flags: <defaults>
</compile_context>

<pallas_src>
import functools

import jax
import jax.numpy as jnp
from jax import lax
from jax.experimental import pallas as pl
from jax.experimental.pallas import tpu as pltpu
from jax.scipy.special import erf as _erf_exact

EPS = 1e-6
_INV_SQRT2 = 0.7071067811865476
_SQRT_2_OVER_PI = 0.7978845608028654
_GELU_C = 0.044715


def _gelu_tanh(x):
    # tanh-formulation GELU: ~8 VPU ops + 1 EUP op (tanh) per element.
    # |gelu_tanh - gelu_erf| <~ 5e-4, inside the 2e-3 test tolerance.
    inner = _SQRT_2_OVER_PI * (x + _GELU_C * (x * x * x))
    return 0.5 * x * (1.0 + jnp.tanh(inner))


def _layernorm_noaffine(x):
    # LayerNorm2d with the per-channel affine folded into the following 1x1 conv:
    # normalize over channels (= sublane axis of (C, L)), biased variance, eps=1e-6.
    mu = jnp.mean(x, axis=0, keepdims=True)
    xc = x - mu
    var = jnp.mean(xc * xc, axis=0, keepdims=True)
    return xc * lax.rsqrt(var + EPS)


def test_block_kernel(C, W, x_ref, wpack_ref, mask_ref, out_ref):
    C2 = 2 * C
    x = x_ref[...]                      # (C, L)  L = images_per_step * H * W
    wp = wpack_ref[...]                 # (C2, 3C+14) packed weights / biases
    masks = mask_ref[...]               # (9, L)  f32 border masks, tap-major

    # --- unpack the single constant tile (static column slices, tiny) ---
    w1 = wp[:, 0:C]                     # conv1 (norm1 affine folded)      (C2, C)
    w2 = wp[:, C:C + 9]                 # depthwise taps, (dy,dx) row-major (C2, 9)
    w4 = wp[:, C + 9:2 * C + 9]         # conv4 (norm2 affine folded)      (C2, C)
    w5t = wp[:, 2 * C + 9:3 * C + 9]    # conv5^T (gamma folded)           (C2, C)
    b1 = wp[:, 3 * C + 9:3 * C + 10]
    b2 = wp[:, 3 * C + 10:3 * C + 11]
    b4 = wp[:, 3 * C + 11:3 * C + 12]
    b5 = wp[:C, 3 * C + 12:3 * C + 13]
    beta = wp[:C, 3 * C + 13:3 * C + 14]

    # ---- norm1 (affine folded) -> conv1 (1x1, c -> 2c) on the MXU ----
    # TODO(synk): for production channel counts, cast matmul operands to bf16
    # (keep preferred_element_type=f32) for native-rate MXU on v6e/v7x.
    xn = _layernorm_noaffine(x)
    t = jnp.dot(w1, xn, preferred_element_type=jnp.float32) + b1          # (C2, L)

    # ---- conv2 (3x3 depthwise, padding=1): 9 XLU rolls on the flat spatial
    #      axis + precomputed border masks (no in-kernel iota / div / mod).
    L = x.shape[1]
    acc = None
    k = 0
    for dy in (-1, 0, 1):
        for dx in (-1, 0, 1):
            off = dy * W + dx           # flat-index offset of this tap
            tap = t if off == 0 else pltpu.roll(t, (-off) % L, 1)
            if not (dy == 0 and dx == 0):
                tap = tap * masks[k:k + 1, :]
            term = tap * w2[:, k:k + 1]
            acc = term if acc is None else acc + term
            k += 1
    t = acc + b2                                                           # (C2, L)

    # ---- SimpleGate + GELU + first residual ----
    g = _gelu_tanh(t[:C, :] * t[C:, :])                                    # (C, L)
    y = x + g * beta

    # ---- norm2 -> conv4 -> gelu -> conv5 (gamma folded) -> second residual ----
    yn = _layernorm_noaffine(y)
    u = _gelu_tanh(jnp.dot(w4, yn, preferred_element_type=jnp.float32) + b4)   # (C2, L)
    v = lax.dot_general(w5t, u, dimension_numbers=(((0,), (0,)), ((), ())),
                        preferred_element_type=jnp.float32) + b5               # (C, L)

    out_ref[...] = y + v


def test_block_pallas(x_nchw, params, images_per_step=None):
    (w1, b1, w2, b2, w4, b4, w5, b5, n1w, n1b, n2w, n2b, beta, gamma) = params
    N, C, H, W = x_nchw.shape
    C2 = 2 * C
    HW = H * W

    if images_per_step is None:
        images_per_step = N            # whole batch in one lane-dense grid step
    assert N % images_per_step == 0
    G = N // images_per_step           # on v7x prefer G >= 2 ("parallel") for both TCs
    L = images_per_step * HW

    # ---- host-side folding of per-channel affines into the 1x1 convs ----
    w1f = w1 * n1w[None, :]            # (C2, C)
    b1f = w1 @ n1b + b1                # (C2,)
    w4f = w4 * n2w[None, :]            # (C2, C)
    b4f = w4 @ n2b + b4                # (C2,)
    w5f = gamma[:, None] * w5          # (C, C2)
    b5f = gamma * b5                   # (C,)
    w2f = w2.reshape(C2, 9)            # depthwise taps, (dy, dx) row-major

    # Pack every weight / bias into ONE small constant array (single DMA):
    #   [0:C) w1f | [C:C+9) w2f | [C+9:2C+9) w4f | [2C+9:3C+9) w5f^T |
    #   col 3C+9 b1f | 3C+10 b2 | 3C+11 b4f | 3C+12 b5f (pad) | 3C+13 beta (pad)
    vecs = jnp.zeros((C2, 5), jnp.float32)
    vecs = vecs.at[:, 0].set(b1f).at[:, 1].set(b2).at[:, 2].set(b4f)
    vecs = vecs.at[:C, 3].set(b5f).at[:C, 4].set(beta)
    wpack = jnp.concatenate([w1f, w2f, w4f, w5f.T, vecs], axis=1)   # (C2, 3C+14)

    # Precomputed border masks for the 9 depthwise taps (tap-major, f32).
    # Derived from the per-image lane position (lane % HW) so rolls never bleed
    # across image boundaries when images are concatenated along the lane axis.
    pos = jnp.arange(L, dtype=jnp.int32) % HW
    row = pos // W
    col = pos % W
    mask_rows = []
    for dy in (-1, 0, 1):
        for dx in (-1, 0, 1):
            m = jnp.ones((L,), jnp.bool_)
            if dy == -1:
                m = m & (row >= 1)
            elif dy == 1:
                m = m & (row <= H - 2)
            if dx == -1:
                m = m & (col >= 1)
            elif dx == 1:
                m = m & (col <= W - 2)
            mask_rows.append(m)
    masks = jnp.stack(mask_rows).astype(jnp.float32)                # (9, L)

    # Batch folded into the lane axis: (N, C, H, W) -> (C, N*HW), lane-dense.
    # TODO(synk): for production sizes on v5e/v6e move activation I/O to bf16
    # (load bf16, compute f32, store bf16) — halves HBM traffic at the mem bound.
    x_flat = jnp.transpose(x_nchw, (1, 0, 2, 3)).reshape(C, N * HW)

    kernel = functools.partial(test_block_kernel, C, W)
    img_spec = pl.BlockSpec((C, L), lambda g: (0, g))

    out = pl.pallas_call(
        kernel,
        out_shape=jax.ShapeDtypeStruct((C, N * HW), jnp.float32),
        grid_spec=pltpu.PrefetchScalarGridSpec(
            num_scalar_prefetch=0,
            grid=(G,),
            in_specs=[
                img_spec,                                            # activations
                pl.BlockSpec((C2, 3 * C + 14), lambda g: (0, 0)),    # packed weights
                pl.BlockSpec((9, L), lambda g: (0, 0)),              # border masks
            ],
            out_specs=img_spec,
        ),
        # TODO(synk): for very large H*W on v7x (64 MiB VMEM) add an H-tile grid
        # axis with a 1-row halo (manual make_async_copy) so one image can be
        # split across both TensorCores and tiles fit the smaller VMEM.
        compiler_params=pltpu.CompilerParams(
            dimension_semantics=("parallel",),
            vmem_limit_bytes=32 * 1024 * 1024,
        ),
    )(x_flat, wpack, masks)

    return jnp.transpose(out.reshape(C, N, H, W), (1, 0, 2, 3))


# ---------------- pure-JAX reference (exact erf GELU, unfolded params) ----------------
def _gelu_ref(x):
    return 0.5 * x * (1.0 + _erf_exact(x * _INV_SQRT2))


def _layernorm2d_ref(x, w, b):
    mu = jnp.mean(x, axis=1, keepdims=True)
    var = jnp.mean((x - mu) ** 2, axis=1, keepdims=True)
    xh = (x - mu) * lax.rsqrt(var + EPS)
    return xh * w[None, :, None, None] + b[None, :, None, None]


def test_block_ref(x, params):
    (w1, b1, w2, b2, w4, b4, w5, b5, n1w, n1b, n2w, n2b, beta, gamma) = params
    N, C, H, W = x.shape

    xn = _layernorm2d_ref(x, n1w, n1b)
    t = jnp.einsum('nchw,dc->ndhw', xn, w1) + b1[None, :, None, None]
    tp = jnp.pad(t, ((0, 0), (0, 0), (1, 1), (1, 1)))
    acc = jnp.zeros_like(t)
    for dy in range(3):
        for dx in range(3):
            acc = acc + tp[:, :, dy:dy + H, dx:dx + W] * w2[None, :, dy, dx, None, None]
    t = acc + b2[None, :, None, None]
    g = _gelu_ref(t[:, :C] * t[:, C:])
    y = x + g * beta[None, :, None, None]
    yn = _layernorm2d_ref(y, n2w, n2b)
    u = _gelu_ref(jnp.einsum('nchw,dc->ndhw', yn, w4) + b4[None, :, None, None])
    v = jnp.einsum('ndhw,cd->nchw', u, w5) + b5[None, :, None, None]
    return y + v * gamma[None, :, None, None]


def make_params(key, C):
    C2 = 2 * C
    ks = jax.random.split(key, 14)
    s = 0.2
    w1 = s * jax.random.normal(ks[0], (C2, C), jnp.float32)
    b1 = s * jax.random.normal(ks[1], (C2,), jnp.float32)
    w2 = s * jax.random.normal(ks[2], (C2, 3, 3), jnp.float32)
    b2 = s * jax.random.normal(ks[3], (C2,), jnp.float32)
    w4 = s * jax.random.normal(ks[4], (C2, C), jnp.float32)
    b4 = s * jax.random.normal(ks[5], (C2,), jnp.float32)
    w5 = s * jax.random.normal(ks[6], (C, C2), jnp.float32)
    b5 = s * jax.random.normal(ks[7], (C,), jnp.float32)
    n1w = 1.0 + s * jax.random.normal(ks[8], (C,), jnp.float32)
    n1b = s * jax.random.normal(ks[9], (C,), jnp.float32)
    n2w = 1.0 + s * jax.random.normal(ks[10], (C,), jnp.float32)
    n2b = s * jax.random.normal(ks[11], (C,), jnp.float32)
    # module inits beta/gamma to zeros; use nonzero values so the full path is exercised
    beta = s * jax.random.normal(ks[12], (C,), jnp.float32)
    gamma = s * jax.random.normal(ks[13], (C,), jnp.float32)
    return (w1, b1, w2, b2, w4, b4, w5, b5, n1w, n1b, n2w, n2b, beta, gamma)


if __name__ == "__main__":
    key = jax.random.PRNGKey(0)
    k_x, k_p = jax.random.split(key)

    N, C, H, W = 2, 4, 16, 16                      # module input layout: NCHW
    x = jax.random.normal(k_x, (N, C, H, W), jnp.float32)
    params = make_params(k_p, C)

    out = jax.block_until_ready(test_block_pallas(x, params))
    ref = test_block_ref(x, params)

    assert out.shape == (N, C, H, W)
    max_err = float(jnp.max(jnp.abs(out - ref)))
    assert jnp.allclose(out, ref, atol=2e-3, rtol=2e-3), "max abs diff %e" % max_err
    print("KERNEL_OK")
</pallas_src>

<mosaic_0001>
module attributes {stable_mosaic.version = 11 : i64} {
  func.func @test_block_kernel(%arg0: i32, %arg1: memref<4x512xf32, #tpu.memory_space<vmem>>, %arg2: memref<8x26xf32, #tpu.memory_space<vmem>>, %arg3: memref<9x512xf32, #tpu.memory_space<vmem>>, %arg4: memref<4x512xf32, #tpu.memory_space<vmem>>) attributes {dimension_semantics = [#tpu.dimension_semantics<parallel>], iteration_bounds = array<i64: 1>, scalar_prefetch = 0 : i64, scratch_operands = 0 : i64, tpu.core_type = #tpu.core_type<tc>, window_params = [{transform_indices = @transform_0, window_bounds = array<i64: 4, 512>}, {pipeline_mode = #tpu.pipeline_mode<synchronous>, transform_indices = @transform_1, window_bounds = array<i64: 8, 26>}, {pipeline_mode = #tpu.pipeline_mode<synchronous>, transform_indices = @transform_2, window_bounds = array<i64: 9, 512>}, {transform_indices = @transform_3, window_bounds = array<i64: 4, 512>}]} {
    %c0 = arith.constant 0 : index
    %c0_0 = arith.constant 0 : index
    %0 = vector.load %arg1[%c0, %c0_0] : memref<4x512xf32, #tpu.memory_space<vmem>>, vector<4x512xf32>
    %c0_1 = arith.constant 0 : index
    %c0_2 = arith.constant 0 : index
    %1 = vector.load %arg2[%c0_1, %c0_2] : memref<8x26xf32, #tpu.memory_space<vmem>>, vector<8x26xf32>
    %c0_3 = arith.constant 0 : index
    %c0_4 = arith.constant 0 : index
    %2 = vector.load %arg3[%c0_3, %c0_4] : memref<9x512xf32, #tpu.memory_space<vmem>>, vector<9x512xf32>
    %3 = vector.extract_strided_slice %1 {offsets = [0, 0], sizes = [8, 4], strides = [1, 1]} : vector<8x26xf32> to vector<8x4xf32>
    %4 = vector.extract_strided_slice %1 {offsets = [0, 4], sizes = [8, 9], strides = [1, 1]} : vector<8x26xf32> to vector<8x9xf32>
    %5 = vector.extract_strided_slice %1 {offsets = [0, 13], sizes = [8, 4], strides = [1, 1]} : vector<8x26xf32> to vector<8x4xf32>
    %6 = vector.extract_strided_slice %1 {offsets = [0, 17], sizes = [8, 4], strides = [1, 1]} : vector<8x26xf32> to vector<8x4xf32>
    %7 = vector.extract_strided_slice %1 {offsets = [0, 21], sizes = [8, 1], strides = [1, 1]} : vector<8x26xf32> to vector<8x1xf32>
    %8 = vector.extract_strided_slice %1 {offsets = [0, 22], sizes = [8, 1], strides = [1, 1]} : vector<8x26xf32> to vector<8x1xf32>
    %9 = vector.extract_strided_slice %1 {offsets = [0, 23], sizes = [8, 1], strides = [1, 1]} : vector<8x26xf32> to vector<8x1xf32>
    %10 = vector.extract_strided_slice %1 {offsets = [0, 24], sizes = [4, 1], strides = [1, 1]} : vector<8x26xf32> to vector<4x1xf32>
    %11 = vector.extract_strided_slice %1 {offsets = [0, 25], sizes = [4, 1], strides = [1, 1]} : vector<8x26xf32> to vector<4x1xf32>
    %cst = arith.constant dense<0.000000e+00> : vector<512xf32>
    %12 = vector.multi_reduction <add>, %0, %cst [0] : vector<4x512xf32> to vector<512xf32>
    %13 = vector.shape_cast %12 : vector<512xf32> to vector<1x512xf32>
    %cst_5 = arith.constant 4.000000e+00 : f32
    %14 = vector.broadcast %cst_5 : f32 to vector<1x512xf32>
    %15 = arith.divf %13, %14 : vector<1x512xf32>
    %16 = vector.broadcast %15 : vector<1x512xf32> to vector<4x512xf32>
    %17 = arith.subf %0, %16 : vector<4x512xf32>
    %18 = arith.mulf %17, %17 : vector<4x512xf32>
    %cst_6 = arith.constant dense<0.000000e+00> : vector<512xf32>
    %19 = vector.multi_reduction <add>, %18, %cst_6 [0] : vector<4x512xf32> to vector<512xf32>
    %20 = vector.shape_cast %19 : vector<512xf32> to vector<1x512xf32>
    %cst_7 = arith.constant 4.000000e+00 : f32
    %21 = vector.broadcast %cst_7 : f32 to vector<1x512xf32>
    %22 = arith.divf %20, %21 : vector<1x512xf32>
    %cst_8 = arith.constant 9.99999997E-7 : f32
    %23 = vector.broadcast %cst_8 : f32 to vector<1x512xf32>
    %24 = arith.addf %22, %23 : vector<1x512xf32>
    %25 = math.rsqrt %24 : vector<1x512xf32>
    %26 = vector.broadcast %25 : vector<1x512xf32> to vector<4x512xf32>
    %27 = arith.mulf %17, %26 : vector<4x512xf32>
    %cst_9 = arith.constant dense<0.000000e+00> : vector<8x512xf32>
    %28 = tpu.matmul %3, %27, %cst_9 {dimension_numbers = #tpu.dot_dimension_numbers<[1], [0], [0], [1], [0, 0, 1, 1], [], []>} : vector<8x4xf32>, vector<4x512xf32>, vector<8x512xf32> -> vector<8x512xf32>
    %29 = vector.broadcast %7 : vector<8x1xf32> to vector<8x512xf32>
    %30 = arith.addf %28, %29 : vector<8x512xf32>
    %c17_i32 = arith.constant 17 : i32
    %31 = tpu.dynamic_rotate %30 by %c17_i32 dim 1 : vector<8x512xf32>, i32 -> vector<8x512xf32>
    %32 = vector.extract_strided_slice %2 {offsets = [0, 0], sizes = [1, 512], strides = [1, 1]} : vector<9x512xf32> to vector<1x512xf32>
    %33 = vector.broadcast %32 : vector<1x512xf32> to vector<8x512xf32>
    %34 = arith.mulf %31, %33 : vector<8x512xf32>
    %35 = vector.extract_strided_slice %4 {offsets = [0, 0], sizes = [8, 1], strides = [1, 1]} : vector<8x9xf32> to vector<8x1xf32>
    %36 = vector.broadcast %35 : vector<8x1xf32> to vector<8x512xf32>
    %37 = arith.mulf %34, %36 : vector<8x512xf32>
    %c16_i32 = arith.constant 16 : i32
    %38 = tpu.dynamic_rotate %30 by %c16_i32 dim 1 : vector<8x512xf32>, i32 -> vector<8x512xf32>
    %39 = vector.extract_strided_slice %2 {offsets = [1, 0], sizes = [1, 512], strides = [1, 1]} : vector<9x512xf32> to vector<1x512xf32>
    %40 = vector.broadcast %39 : vector<1x512xf32> to vector<8x512xf32>
    %41 = arith.mulf %38, %40 : vector<8x512xf32>
    %42 = vector.extract_strided_slice %4 {offsets = [0, 1], sizes = [8, 1], strides = [1, 1]} : vector<8x9xf32> to vector<8x1xf32>
    %43 = vector.broadcast %42 : vector<8x1xf32> to vector<8x512xf32>
    %44 = arith.mulf %41, %43 : vector<8x512xf32>
    %45 = arith.addf %37, %44 : vector<8x512xf32>
    %c15_i32 = arith.constant 15 : i32
    %46 = tpu.dynamic_rotate %30 by %c15_i32 dim 1 : vector<8x512xf32>, i32 -> vector<8x512xf32>
    %47 = vector.extract_strided_slice %2 {offsets = [2, 0], sizes = [1, 512], strides = [1, 1]} : vector<9x512xf32> to vector<1x512xf32>
    %48 = vector.broadcast %47 : vector<1x512xf32> to vector<8x512xf32>
    %49 = arith.mulf %46, %48 : vector<8x512xf32>
    %50 = vector.extract_strided_slice %4 {offsets = [0, 2], sizes = [8, 1], strides = [1, 1]} : vector<8x9xf32> to vector<8x1xf32>
    %51 = vector.broadcast %50 : vector<8x1xf32> to vector<8x512xf32>
    %52 = arith.mulf %49, %51 : vector<8x512xf32>
    %53 = arith.addf %45, %52 : vector<8x512xf32>
    %c1_i32 = arith.constant 1 : i32
    %54 = tpu.dynamic_rotate %30 by %c1_i32 dim 1 : vector<8x512xf32>, i32 -> vector<8x512xf32>
    %55 = vector.extract_strided_slice %2 {offsets = [3, 0], sizes = [1, 512], strides = [1, 1]} : vector<9x512xf32> to vector<1x512xf32>
    %56 = vector.broadcast %55 : vector<1x512xf32> to vector<8x512xf32>
    %57 = arith.mulf %54, %56 : vector<8x512xf32>
    %58 = vector.extract_strided_slice %4 {offsets = [0, 3], sizes = [8, 1], strides = [1, 1]} : vector<8x9xf32> to vector<8x1xf32>
    %59 = vector.broadcast %58 : vector<8x1xf32> to vector<8x512xf32>
    %60 = arith.mulf %57, %59 : vector<8x512xf32>
    %61 = arith.addf %53, %60 : vector<8x512xf32>
    %62 = vector.extract_strided_slice %4 {offsets = [0, 4], sizes = [8, 1], strides = [1, 1]} : vector<8x9xf32> to vector<8x1xf32>
    %63 = vector.broadcast %62 : vector<8x1xf32> to vector<8x512xf32>
    %64 = arith.mulf %30, %63 : vector<8x512xf32>
    %65 = arith.addf %61, %64 : vector<8x512xf32>
    %c511_i32 = arith.constant 511 : i32
    %66 = tpu.dynamic_rotate %30 by %c511_i32 dim 1 : vector<8x512xf32>, i32 -> vector<8x512xf32>
    %67 = vector.extract_strided_slice %2 {offsets = [5, 0], sizes = [1, 512], strides = [1, 1]} : vector<9x512xf32> to vector<1x512xf32>
    %68 = vector.broadcast %67 : vector<1x512xf32> to vector<8x512xf32>
    %69 = arith.mulf %66, %68 : vector<8x512xf32>
    %70 = vector.extract_strided_slice %4 {offsets = [0, 5], sizes = [8, 1], strides = [1, 1]} : vector<8x9xf32> to vector<8x1xf32>
    %71 = vector.broadcast %70 : vector<8x1xf32> to vector<8x512xf32>
    %72 = arith.mulf %69, %71 : vector<8x512xf32>
    %73 = arith.addf %65, %72 : vector<8x512xf32>
    %c497_i32 = arith.constant 497 : i32
    %74 = tpu.dynamic_rotate %30 by %c497_i32 dim 1 : vector<8x512xf32>, i32 -> vector<8x512xf32>
    %75 = vector.extract_strided_slice %2 {offsets = [6, 0], sizes = [1, 512], strides = [1, 1]} : vector<9x512xf32> to vector<1x512xf32>
    %76 = vector.broadcast %75 : vector<1x512xf32> to vector<8x512xf32>
    %77 = arith.mulf %74, %76 : vector<8x512xf32>
    %78 = vector.extract_strided_slice %4 {offsets = [0, 6], sizes = [8, 1], strides = [1, 1]} : vector<8x9xf32> to vector<8x1xf32>
    %79 = vector.broadcast %78 : vector<8x1xf32> to vector<8x512xf32>
    %80 = arith.mulf %77, %79 : vector<8x512xf32>
    %81 = arith.addf %73, %80 : vector<8x512xf32>
    %c496_i32 = arith.constant 496 : i32
    %82 = tpu.dynamic_rotate %30 by %c496_i32 dim 1 : vector<8x512xf32>, i32 -> vector<8x512xf32>
    %83 = vector.extract_strided_slice %2 {offsets = [7, 0], sizes = [1, 512], strides = [1, 1]} : vector<9x512xf32> to vector<1x512xf32>
    %84 = vector.broadcast %83 : vector<1x512xf32> to vector<8x512xf32>
    %85 = arith.mulf %82, %84 : vector<8x512xf32>
    %86 = vector.extract_strided_slice %4 {offsets = [0, 7], sizes = [8, 1], strides = [1, 1]} : vector<8x9xf32> to vector<8x1xf32>
    %87 = vector.broadcast %86 : vector<8x1xf32> to vector<8x512xf32>
    %88 = arith.mulf %85, %87 : vector<8x512xf32>
    %89 = arith.addf %81, %88 : vector<8x512xf32>
    %c495_i32 = arith.constant 495 : i32
    %90 = tpu.dynamic_rotate %30 by %c495_i32 dim 1 : vector<8x512xf32>, i32 -> vector<8x512xf32>
    %91 = vector.extract_strided_slice %2 {offsets = [8, 0], sizes = [1, 512], strides = [1, 1]} : vector<9x512xf32> to vector<1x512xf32>
    %92 = vector.broadcast %91 : vector<1x512xf32> to vector<8x512xf32>
    %93 = arith.mulf %90, %92 : vector<8x512xf32>
    %94 = vector.extract_strided_slice %4 {offsets = [0, 8], sizes = [8, 1], strides = [1, 1]} : vector<8x9xf32> to vector<8x1xf32>
    %95 = vector.broadcast %94 : vector<8x1xf32> to vector<8x512xf32>
    %96 = arith.mulf %93, %95 : vector<8x512xf32>
    %97 = arith.addf %89, %96 : vector<8x512xf32>
    %98 = vector.broadcast %8 : vector<8x1xf32> to vector<8x512xf32>
    %99 = arith.addf %97, %98 : vector<8x512xf32>
    %100 = vector.extract_strided_slice %99 {offsets = [0, 0], sizes = [4, 512], strides = [1, 1]} : vector<8x512xf32> to vector<4x512xf32>
    %101 = vector.extract_strided_slice %99 {offsets = [4, 0], sizes = [4, 512], strides = [1, 1]} : vector<8x512xf32> to vector<4x512xf32>
    %102 = arith.mulf %100, %101 : vector<4x512xf32>
    %103 = arith.mulf %102, %102 : vector<4x512xf32>
    %104 = arith.mulf %103, %102 : vector<4x512xf32>
    %cst_10 = arith.constant 4.471500e-02 : f32
    %105 = vector.broadcast %cst_10 : f32 to vector<4x512xf32>
    %106 = arith.mulf %105, %104 : vector<4x512xf32>
    %107 = arith.addf %102, %106 : vector<4x512xf32>
    %cst_11 = arith.constant 0.797884583 : f32
    %108 = vector.broadcast %cst_11 : f32 to vector<4x512xf32>
    %109 = arith.mulf %108, %107 : vector<4x512xf32>
    %cst_12 = arith.constant 5.000000e-01 : f32
    %110 = vector.broadcast %cst_12 : f32 to vector<4x512xf32>
    %111 = arith.mulf %110, %102 : vector<4x512xf32>
    %112 = math.tanh %109 : vector<4x512xf32>
    %cst_13 = arith.constant 1.000000e+00 : f32
    %113 = vector.broadcast %cst_13 : f32 to vector<4x512xf32>
    %114 = arith.addf %113, %112 : vector<4x512xf32>
    %115 = arith.mulf %111, %114 : vector<4x512xf32>
    %116 = vector.broadcast %11 : vector<4x1xf32> to vector<4x512xf32>
    %117 = arith.mulf %115, %116 : vector<4x512xf32>
    %118 = arith.addf %0, %117 : vector<4x512xf32>
    %cst_14 = arith.constant dense<0.000000e+00> : vector<512xf32>
    %119 = vector.multi_reduction <add>, %118, %cst_14 [0] : vector<4x512xf32> to vector<512xf32>
    %120 = vector.shape_cast %119 : vector<512xf32> to vector<1x512xf32>
    %cst_15 = arith.constant 4.000000e+00 : f32
    %121 = vector.broadcast %cst_15 : f32 to vector<1x512xf32>
    %122 = arith.divf %120, %121 : vector<1x512xf32>
    %123 = vector.broadcast %122 : vector<1x512xf32> to vector<4x512xf32>
    %124 = arith.subf %118, %123 : vector<4x512xf32>
    %125 = arith.mulf %124, %124 : vector<4x512xf32>
    %cst_16 = arith.constant dense<0.000000e+00> : vector<512xf32>
    %126 = vector.multi_reduction <add>, %125, %cst_16 [0] : vector<4x512xf32> to vector<512xf32>
    %127 = vector.shape_cast %126 : vector<512xf32> to vector<1x512xf32>
    %cst_17 = arith.constant 4.000000e+00 : f32
    %128 = vector.broadcast %cst_17 : f32 to vector<1x512xf32>
    %129 = arith.divf %127, %128 : vector<1x512xf32>
    %cst_18 = arith.constant 9.99999997E-7 : f32
    %130 = vector.broadcast %cst_18 : f32 to vector<1x512xf32>
    %131 = arith.addf %129, %130 : vector<1x512xf32>
    %132 = math.rsqrt %131 : vector<1x512xf32>
    %133 = vector.broadcast %132 : vector<1x512xf32> to vector<4x512xf32>
    %134 = arith.mulf %124, %133 : vector<4x512xf32>
    %cst_19 = arith.constant dense<0.000000e+00> : vector<8x512xf32>
    %135 = tpu.matmul %5, %134, %cst_19 {dimension_numbers = #tpu.dot_dimension_numbers<[1], [0], [0], [1], [0, 0, 1, 1], [], []>} : vector<8x4xf32>, vector<4x512xf32>, vector<8x512xf32> -> vector<8x512xf32>
    %136 = vector.broadcast %9 : vector<8x1xf32> to vector<8x512xf32>
    %137 = arith.addf %135, %136 : vector<8x512xf32>
    %138 = arith.mulf %137, %137 : vector<8x512xf32>
    %139 = arith.mulf %138, %137 : vector<8x512xf32>
    %cst_20 = arith.constant 4.471500e-02 : f32
    %140 = vector.broadcast %cst_20 : f32 to vector<8x512xf32>
    %141 = arith.mulf %140, %139 : vector<8x512xf32>
    %142 = arith.addf %137, %141 : vector<8x512xf32>
    %cst_21 = arith.constant 0.797884583 : f32
    %143 = vector.broadcast %cst_21 : f32 to vector<8x512xf32>
    %144 = arith.mulf %143, %142 : vector<8x512xf32>
    %cst_22 = arith.constant 5.000000e-01 : f32
    %145 = vector.broadcast %cst_22 : f32 to vector<8x512xf32>
    %146 = arith.mulf %145, %137 : vector<8x512xf32>
    %147 = math.tanh %144 : vector<8x512xf32>
    %cst_23 = arith.constant 1.000000e+00 : f32
    %148 = vector.broadcast %cst_23 : f32 to vector<8x512xf32>
    %149 = arith.addf %148, %147 : vector<8x512xf32>
    %150 = arith.mulf %146, %149 : vector<8x512xf32>
    %cst_24 = arith.constant dense<0.000000e+00> : vector<4x512xf32>
    %151 = tpu.matmul %6, %150, %cst_24 {dimension_numbers = #tpu.dot_dimension_numbers<[0], [0], [1], [1], [0, 1, 1, 1], [], []>} : vector<8x4xf32>, vector<8x512xf32>, vector<4x512xf32> -> vector<4x512xf32>
    %152 = vector.broadcast %10 : vector<4x1xf32> to vector<4x512xf32>
    %153 = arith.addf %151, %152 : vector<4x512xf32>
    %154 = arith.addf %118, %153 : vector<4x512xf32>
    %c0_25 = arith.constant 0 : index
    %c0_26 = arith.constant 0 : index
    %155 = vector.load %arg4[%c0_25, %c0_26] : memref<4x512xf32, #tpu.memory_space<vmem>>, vector<4x512xf32>
    tpu.vector_store %arg4[%c0_25, %c0_26], %154 {strides = array<i32>} : memref<4x512xf32, #tpu.memory_space<vmem>>, vector<4x512xf32>,
    return
  }
  func.func @transform_0(%arg0: i32) -> (i32, i32) {
    %c0_i32 = arith.constant 0 : i32
    %c0_i32_0 = arith.constant 0 : i32
    return %c0_i32, %arg0 : i32, i32
  }
  func.func @transform_1(%arg0: i32) -> (i32, i32) {
    %c0_i32 = arith.constant 0 : i32
    %c0_i32_0 = arith.constant 0 : i32
    %c0_i32_1 = arith.constant 0 : i32
    return %c0_i32, %c0_i32_0 : i32, i32
  }
  func.func @transform_2(%arg0: i32) -> (i32, i32) {
    %c0_i32 = arith.constant 0 : i32
    %c0_i32_0 = arith.constant 0 : i32
    %c0_i32_1 = arith.constant 0 : i32
    return %c0_i32, %c0_i32_0 : i32, i32
  }
  func.func @transform_3(%arg0: i32) -> (i32, i32) {
    %c0_i32 = arith.constant 0 : i32
    %c0_i32_0 = arith.constant 0 : i32
    return %c0_i32, %arg0 : i32, i32
  }
}

</mosaic_0001>

<llo_original>
// kernel: tpu_custom_call.1
$region0: #{tpu_custom_call.1}
  #allocation0 [shape = 'u32[]', space=smem, size = 0x4, offset = 0x4, fixed_abs, tag = 'smem constant byte address 0x4 - core index']
  #allocation1 [shape = 'u32[144,128]{1,0:T(1,128)}', space=vmem, size = 0x12000, scoped, tag = 'internal scratch']
  %s0 = inlined_call_operand.hbm [shape: f32[4,512], index: 0, kind: input, shape index: {}]
  %s1 = inlined_call_operand.hbm [shape: f32[8,26], index: 1, kind: input, shape index: {}]
  %s2 = inlined_call_operand.hbm [shape: f32[9,512], index: 2, kind: input, shape index: {}]
  %s3 = inlined_call_operand.hbm [shape: f32[4,512], index: 3, kind: output, shape index: {}]
  %s4 = sld [smem:[#allocation0]]
  $region34: #{tpu_custom_call.1} parent=0
    _
  %s6 = ssub.s32 1, %s4
  %s7 = scalar_select 0, %s6, %s4
  $region1: #{tpu_custom_call.1} parent=0
    #allocation2 [shape = 'u8[8192]{0}', space=vmem, size = 0x2000, scoped, tag = 'input window, operand 0, single buffered']
    #allocation3 [shape = 's32[1]{0}', space=sflag, size = 0x4, scoped, tag = 'scoped memory for tpu_custom_call.1']
    #allocation4 [shape = 's32[1]{0}', space=sflag, size = 0x4, scoped, tag = 'scoped memory for tpu_custom_call.1']
    #allocation5 [shape = 'u8[4096]{0}', space=vmem, size = 0x1000, scoped, tag = 'input window, operand 1, single buffered']
    #allocation6 [shape = 's32[1]{0}', space=sflag, size = 0x4, scoped, tag = 'scoped memory for tpu_custom_call.1']
    #allocation7 [shape = 'u8[32768]{0}', space=vmem, size = 0x8000, scoped, tag = 'input window, operand 2, single buffered']
    #allocation8 [shape = 'u8[8192]{0}', space=vmem, size = 0x2000, scoped, tag = 'output window, operand 0, single buffered']
    %8 = vsyncpa [#allocation3], 0
    %9 = vsyncpa [#allocation6], 0
    %10 = vsyncpa [#allocation4], 0
    // Predicated region
    $region2: #{tpu_custom_call.1} parent=1 // pred_check
      _
    $region3: #{tpu_custom_call.1} parent=1 // pred_check_branch
      %12 = sbr.rel (0) target = $region5
    $region4: #{tpu_custom_call.1} parent=1 // pred_region
      %s14 = ssub.s32 256, 256
      %15 = vsyncadd [#allocation3], %s14
      %s17 = sshll.u32 [#allocation2], 4
      %s18 = int_to_ptr.vmem [resolvable:$true] %s17
      %20 = dma.hbm_to_vmem [thread:$0]  %s0, 256, %s18, [#allocation3]
    $region5: #{tpu_custom_call.1} parent=1 // pred_fallthru
      _
    // Predicated region
    $region6: #{tpu_custom_call.1} parent=1 // pred_check
      _
    $region7: #{tpu_custom_call.1} parent=1 // pred_check_branch
      %22 = sbr.rel (0) target = $region9
    $region8: #{tpu_custom_call.1} parent=1 // pred_region
      %s24 = ssub.s32 128, 128
      %25 = vsyncadd [#allocation6], %s24
      %s27 = sshll.u32 [#allocation5], 4
      %s28 = int_to_ptr.vmem [resolvable:$true] %s27
      %30 = dma.hbm_to_vmem [thread:$0]  %s1, 128, %s28, [#allocation6]
    $region9: #{tpu_custom_call.1} parent=1 // pred_fallthru
      _
    // Predicated region
    $region10: #{tpu_custom_call.1} parent=1 // pred_check
      _
    $region11: #{tpu_custom_call.1} parent=1 // pred_check_branch
      %32 = sbr.rel (0) target = $region13
    $region12: #{tpu_custom_call.1} parent=1 // pred_region
      %s34 = ssub.s32 1024, 1024
      %35 = vsyncadd [#allocation6], %s34
      %s36 = sshll.u32 [#allocation7], 4
      %s37 = int_to_ptr.vmem [resolvable:$true] %s36
      %42 = dma.hbm_to_vmem [thread:$0]  %s2, 1024, %s37, [#allocation6], 512, 512, 32
    $region13: #{tpu_custom_call.1} parent=1 // pred_fallthru
      _
    // Predicated region
    $region14: #{tpu_custom_call.1} parent=1 // pred_check
      _
    $region15: #{tpu_custom_call.1} parent=1 // pred_check_branch
      %44 = sbr.rel (0) target = $region17
    $region16: #{tpu_custom_call.1} parent=1 // pred_region
      %45 = dma.done [#allocation3], 256
    $region17: #{tpu_custom_call.1} parent=1 // pred_fallthru
      _
    // Predicated region
    $region18: #{tpu_custom_call.1} parent=1 // pred_check
      _
    $region19: #{tpu_custom_call.1} parent=1 // pred_check_branch
      %47 = sbr.rel (0) target = $region21
    $region20: #{tpu_custom_call.1} parent=1 // pred_region
      %48 = dma.done [#allocation6], 128
    $region21: #{tpu_custom_call.1} parent=1 // pred_fallthru
      _
    // Predicated region
    $region22: #{tpu_custom_call.1} parent=1 // pred_check
      _
    $region23: #{tpu_custom_call.1} parent=1 // pred_check_branch
      %50 = sbr.rel (0) target = $region25
    $region24: #{tpu_custom_call.1} parent=1 // pred_region
      %51 = dma.done [#allocation6], 1024
    $region25: #{tpu_custom_call.1} parent=1 // pred_fallthru
      _
    %v52 = vld [vmem:[#allocation2] sm:$0xff]
    %v53 = vld [vmem:[#allocation2 + $0x8] sm:$0xff]
    %v54 = vld [vmem:[#allocation5] sm:$0xff]
    %v55 = vld [vmem:[#allocation7] sm:$0xff]
    %v56 = vld [vmem:[#allocation7 + $0x8] sm:$0xff]
    %v57 = vld [vmem:[#allocation7 + $0x10] sm:$0xff]
    %v58 = vld [vmem:[#allocation7 + $0x18] sm:$0xff]
    %v59 = vld [vmem:[#allocation7 + $0x20] sm:$0x1]
    %v60 = vld [vmem:[#allocation7 + $0x28] sm:$0x1]
    %v61 = vld [vmem:[#allocation7 + $0x30] sm:$0x1]
    %v62 = vld [vmem:[#allocation7 + $0x38] sm:$0x1]
    %v65 = vcombine.high %v52, %v52
    %v66 = vcombine.high %v53, %v53
    %vm69 = vcmask 1043456
    %v70 = vsel %vm69, %v52, 0.0
    %v71 = vrot.slane %v70, 4
    %v72 = vadd.f32 %v70, %v71
    %v73 = vrot.slane %v72, 2
    %v74 = vadd.f32 %v72, %v73
    %v75 = vrot.slane %v74, 1
    %v76 = vadd.f32 %v74, %v75
    %v77 = vsel %vm69, %v65, 0.0
    %v78 = vrot.slane %v77, 4
    %v79 = vadd.f32 %v77, %v78
    %v80 = vrot.slane %v79, 2
    %v81 = vadd.f32 %v79, %v80
    %v82 = vrot.slane %v81, 1
    %v83 = vadd.f32 %v81, %v82
    %v84 = vsel %vm69, %v53, 0.0
    %v85 = vrot.slane %v84, 4
    %v86 = vadd.f32 %v84, %v85
    %v87 = vrot.slane %v86, 2
    %v88 = vadd.f32 %v86, %v87
    %v89 = vrot.slane %v88, 1
    %v90 = vadd.f32 %v88, %v89
    %v91 = vsel %vm69, %v66, 0.0
    %v92 = vrot.slane %v91, 4
    %v93 = vadd.f32 %v91, %v92
    %v94 = vrot.slane %v93, 2
    %v95 = vadd.f32 %v93, %v94
    %v96 = vrot.slane %v95, 1
    %v97 = vadd.f32 %v95, %v96
    %v98 = vrcp.pop 4.0
    %v99 = vmul.f32 %v76, %v98
    %v100 = vmul.f32 %v83, %v98
    %v101 = vmul.f32 %v90, %v98
    %v102 = vmul.f32 %v97, %v98
    %v107 = vcombine.low %v99, %v100
    %v108 = vcombine.low %v101, %v102
    %v111 = vsub.f32 %v52, %v107
    %v112 = vsub.f32 %v53, %v108
    %v113 = vmul.f32 %v111, %v111
    %v114 = vmul.f32 %v112, %v112
    %v117 = vcombine.high %v113, %v113
    %v118 = vcombine.high %v114, %v114
    %v121 = vsel %vm69, %v113, 0.0
    %v122 = vrot.slane %v121, 4
    %v123 = vadd.f32 %v121, %v122
    %v124 = vrot.slane %v123, 2
    %v125 = vadd.f32 %v123, %v124
    %v126 = vrot.slane %v125, 1
    %v127 = vadd.f32 %v125, %v126
    %v128 = vsel %vm69, %v117, 0.0
    %v129 = vrot.slane %v128, 4
    %v130 = vadd.f32 %v128, %v129
    %v131 = vrot.slane %v130, 2
    %v132 = vadd.f32 %v130, %v131
    %v133 = vrot.slane %v132, 1
    %v134 = vadd.f32 %v132, %v133
    %v135 = vsel %vm69, %v114, 0.0
    %v136 = vrot.slane %v135, 4
    %v137 = vadd.f32 %v135, %v136
    %v138 = vrot.slane %v137, 2
    %v139 = vadd.f32 %v137, %v138
    %v140 = vrot.slane %v139, 1
    %v141 = vadd.f32 %v139, %v140
    %v142 = vsel %vm69, %v118, 0.0
    %v143 = vrot.slane %v142, 4
    %v144 = vadd.f32 %v142, %v143
    %v145 = vrot.slane %v144, 2
    %v146 = vadd.f32 %v144, %v145
    %v147 = vrot.slane %v146, 1
    %v148 = vadd.f32 %v146, %v147
    %v149 = vmul.f32 %v127, %v98
    %v150 = vmul.f32 %v134, %v98
    %v151 = vmul.f32 %v141, %v98
    %v152 = vmul.f32 %v148, %v98
    %v153 = vadd.f32 %v149, 1e-06
    %v154 = vadd.f32 %v150, 1e-06
    %v155 = vadd.f32 %v151, 1e-06
    %v156 = vadd.f32 %v152, 1e-06
    %v157 = vrsqrt.pop %v153
    %v158 = vrsqrt.pop %v154
    %v159 = vrsqrt.pop %v155
    %v160 = vrsqrt.pop %v156
    %v165 = vcombine.low %v157, %v158
    %v166 = vcombine.low %v159, %v160
    %v169 = vmul.f32 %v111, %v165
    %v170 = vmul.f32 %v112, %v166
    %172 = vset.pattern.permute.xlu0 21
    %173 = vperm.xlu0 %172, %v54
    %v174 = vpop.permute.xlu0 %173
    %v178 = vcombine.high %v169, %v169
    %v179 = vcombine.high %v170, %v170
    %vm180 = vcmask 31744
    %v181 = vsel %vm180, %v54, 0
    %v183 = vsel %vm69, %v169, 0
    %v185 = vsel %vm69, %v178, 0
    %v187 = vsel %vm69, %v170, 0
    %v189 = vsel %vm69, %v179, 0
    %191 = vmatprep.subr.mxu0 %v185
    %192 = vmatpush1.msra.mxu0 %v183
    %193 = vmatprep.subr.mxu0 0.0
    %194 = vmatpush1.msra.mxu0 0.0
    %195 = vmatprep.subr.mxu0 0.0
    %196 = vmatpush1.msra.mxu0 0.0
    %197 = vmatprep.subr.mxu0 0.0
    %198 = vmatpush1.msra.mxu0 0.0
    %199 = vmatprep.subr.mxu0 0.0
    %200 = vmatpush1.msra.mxu0 0.0
    %201 = vmatprep.subr.mxu0 0.0
    %202 = vmatpush1.msra.mxu0 0.0
    %203 = vmatprep.subr.mxu0 0.0
    %204 = vmatpush1.msra.mxu0 0.0
    %205 = vmatprep.subr.mxu0 0.0
    %206 = vmatpush1.msra.mxu0 0.0
    %207 = vmatprep.subr.mxu0 0.0
    %208 = vmatpush1.msra.mxu0 0.0
    %209 = vmatprep.subr.mxu0 0.0
    %210 = vmatpush1.msra.mxu0 0.0
    %211 = vmatprep.subr.mxu0 0.0
    %212 = vmatpush1.msra.mxu0 0.0
    %213 = vmatprep.subr.mxu0 0.0
    %214 = vmatpush1.msra.mxu0 0.0
    %215 = vmatprep.subr.mxu0 0.0
    %216 = vmatpush1.msra.mxu0 0.0
    %217 = vmatprep.subr.mxu0 0.0
    %218 = vmatpush1.msra.mxu0 0.0
    %219 = vmatprep.subr.mxu0 0.0
    %220 = vmatpush1.msra.mxu0 0.0
    %221 = vmatprep.subr.mxu0 0.0
    %222 = vmatpush1.msra.mxu0 0.0
    %223 = vmatprep.subr.mxu0 0.0
    %224 = vmatpush1.msra.mxu0 0.0
    %225 = vmatprep.subr.mxu0 0.0
    %226 = vmatpush1.msra.mxu0 0.0
    %227 = vmatprep.subr.mxu0 0.0
    %228 = vmatpush1.msra.mxu0 0.0
    %229 = vmatprep.subr.mxu0 0.0
    %230 = vmatpush1.msra.mxu0 0.0
    %231 = vmatprep.subr.mxu0 0.0
    %232 = vmatpush1.msra.mxu0 0.0
    %233 = vmatprep.subr.mxu0 0.0
    %234 = vmatpush1.msra.mxu0 0.0
    %235 = vmatprep.subr.mxu0 0.0
    %236 = vmatpush1.msra.mxu0 0.0
    %237 = vmatprep.subr.mxu0 0.0
    %238 = vmatpush1.msra.mxu0 0.0
    %239 = vmatprep.subr.mxu0 0.0
    %240 = vmatpush1.msra.mxu0 0.0
    %241 = vmatprep.subr.mxu0 0.0
    %242 = vmatpush1.msra.mxu0 0.0
    %243 = vmatprep.subr.mxu0 0.0
    %244 = vmatpush1.msra.mxu0 0.0
    %245 = vmatprep.subr.mxu0 0.0
    %246 = vmatpush1.msra.mxu0 0.0
    %247 = vmatprep.subr.mxu0 0.0
    %248 = vmatpush1.msra.mxu0 0.0
    %249 = vmatprep.subr.mxu0 0.0
    %250 = vmatpush1.msra.mxu0 0.0
    %251 = vmatprep.subr.mxu0 0.0
    %252 = vmatpush1.msra.mxu0 0.0
    %253 = vmatprep.subr.mxu0 0.0
    %254 = vmatpush1.msra.mxu0 0.0
    %255 = vmatprep.mubr.f32.mxu0 0.0
    %256 = vmatmul.mubr.f32.gmra.mrb[0].mxu0 %v181
    %v257 = vpop.f32.mrb[0].mxu0
    %v258 = vadd.f32 %v174, %v257
    %v259 = vpop.f32.mrb[0].mxu0
    %v260 = vadd.f32 %v174, %v259
    %261 = vdwg.mxu0
    %262 = vmatprep.subr.mxu0 %v189
    %263 = vmatpush1.msra.mxu0 %v187
    %264 = vmatprep.subr.mxu0 0.0
    %265 = vmatpush1.msra.mxu0 0.0
    %266 = vmatprep.subr.mxu0 0.0
    %267 = vmatpush1.msra.mxu0 0.0
    %268 = vmatprep.subr.mxu0 0.0
    %269 = vmatpush1.msra.mxu0 0.0
    %270 = vmatprep.subr.mxu0 0.0
    %271 = vmatpush1.msra.mxu0 0.0
    %272 = vmatprep.subr.mxu0 0.0
    %273 = vmatpush1.msra.mxu0 0.0
    %274 = vmatprep.subr.mxu0 0.0
    %275 = vmatpush1.msra.mxu0 0.0
    %276 = vmatprep.subr.mxu0 0.0
    %277 = vmatpush1.msra.mxu0 0.0
    %278 = vmatprep.subr.mxu0 0.0
    %279 = vmatpush1.msra.mxu0 0.0
    %280 = vmatprep.subr.mxu0 0.0
    %281 = vmatpush1.msra.mxu0 0.0
    %282 = vmatprep.subr.mxu0 0.0
    %283 = vmatpush1.msra.mxu0 0.0
    %284 = vmatprep.subr.mxu0 0.0
    %285 = vmatpush1.msra.mxu0 0.0
    %286 = vmatprep.subr.mxu0 0.0
    %287 = vmatpush1.msra.mxu0 0.0
    %288 = vmatprep.subr.mxu0 0.0
    %289 = vmatpush1.msra.mxu0 0.0
    %290 = vmatprep.subr.mxu0 0.0
    %291 = vmatpush1.msra.mxu0 0.0
    %292 = vmatprep.subr.mxu0 0.0
    %293 = vmatpush1.msra.mxu0 0.0
    %294 = vmatprep.subr.mxu0 0.0
    %295 = vmatpush1.msra.mxu0 0.0
    %296 = vmatprep.subr.mxu0 0.0
    %297 = vmatpush1.msra.mxu0 0.0
    %298 = vmatprep.subr.mxu0 0.0
    %299 = vmatpush1.msra.mxu0 0.0
    %300 = vmatprep.subr.mxu0 0.0
    %301 = vmatpush1.msra.mxu0 0.0
    %302 = vmatprep.subr.mxu0 0.0
    %303 = vmatpush1.msra.mxu0 0.0
    %304 = vmatprep.subr.mxu0 0.0
    %305 = vmatpush1.msra.mxu0 0.0
    %306 = vmatprep.subr.mxu0 0.0
    %307 = vmatpush1.msra.mxu0 0.0
    %308 = vmatprep.subr.mxu0 0.0
    %309 = vmatpush1.msra.mxu0 0.0
    %310 = vmatprep.subr.mxu0 0.0
    %311 = vmatpush1.msra.mxu0 0.0
    %312 = vmatprep.subr.mxu0 0.0
    %313 = vmatpush1.msra.mxu0 0.0
    %314 = vmatprep.subr.mxu0 0.0
    %315 = vmatpush1.msra.mxu0 0.0
    %316 = vmatprep.subr.mxu0 0.0
    %317 = vmatpush1.msra.mxu0 0.0
    %318 = vmatprep.subr.mxu0 0.0
    %319 = vmatpush1.msra.mxu0 0.0
    %320 = vmatprep.subr.mxu0 0.0
    %321 = vmatpush1.msra.mxu0 0.0
    %322 = vmatprep.subr.mxu0 0.0
    %323 = vmatpush1.msra.mxu0 0.0
    %324 = vmatprep.subr.mxu0 0.0
    %325 = vmatpush1.msra.mxu0 0.0
    %326 = vmatprep.mubr.f32.mxu0 0.0
    %327 = vmatmul.mubr.f32.gmra.mrb[0].mxu0 %v181
    %v328 = vpop.f32.mrb[0].mxu0
    %v329 = vadd.f32 %v174, %v328
    %v330 = vpop.f32.mrb[0].mxu0
    %v331 = vadd.f32 %v174, %v330
    %332 = vdwg.mxu0
    %333 = vrot.lane.b32.xlu0 %v258, 17
    %v334 = vpop.permute.xlu0 %333
    %335 = vrot.lane.b32.xlu0 %v260, 17
    %v336 = vpop.permute.xlu0 %335
    %337 = vrot.lane.b32.xlu0 %v329, 17
    %v338 = vpop.permute.xlu0 %337
    %339 = vrot.lane.b32.xlu0 %v331, 17
    %v340 = vpop.permute.xlu0 %339
    %v341 = vlaneseq
    %v342 = vand.u32 %v341, 127
    %vm343 = vcmp.lt.s32.totalorder %v342, 17
    %v344 = vsel %vm343, %v338, %v340
    %v345 = vsel %vm343, %v336, %v338
    %v346 = vsel %vm343, %v334, %v336
    %v347 = vsel %vm343, %v340, %v334
    %v348 = vlaneseq
    %v349 = vshrl.u32 %v348, 7
    %v350 = vsub.s32 0, %v349
    %v351 = vrot.slane %v55, %v350
    %v352 = vlaneseq
    %v353 = vshrl.u32 %v352, 7
    %v354 = vsub.s32 0, %v353
    %v355 = vrot.slane %v56, %v354
    %v356 = vlaneseq
    %v357 = vshrl.u32 %v356, 7
    %v358 = vsub.s32 0, %v357
    %v359 = vrot.slane %v57, %v358
    %v360 = vlaneseq
    %v361 = vshrl.u32 %v360, 7
    %v362 = vsub.s32 0, %v361
    %v363 = vrot.slane %v58, %v362
    %v364 = vmul.f32 %v347, %v351
    %v365 = vmul.f32 %v346, %v355
    %v366 = vmul.f32 %v345, %v359
    %v367 = vmul.f32 %v344, %v363
    %368 = vset.pattern.permute.xlu0 4
    %369 = vperm.xlu0 %368, %v54
    %v370 = vpop.permute.xlu0 %369
    %v372 = vmul.f32 %v364, %v370
    %v373 = vmul.f32 %v365, %v370
    %v374 = vmul.f32 %v366, %v370
    %v375 = vmul.f32 %v367, %v370
    %376 = vrot.lane.b32.xlu0 %v258, 16
    %v377 = vpop.permute.xlu0 %376
    %378 = vrot.lane.b32.xlu0 %v260, 16
    %v379 = vpop.permute.xlu0 %378
    %380 = vrot.lane.b32.xlu0 %v329, 16
    %v381 = vpop.permute.xlu0 %380
    %382 = vrot.lane.b32.xlu0 %v331, 16
    %v383 = vpop.permute.xlu0 %382
    %vm384 = vcmp.lt.s32.totalorder %v342, 16
    %v385 = vsel %vm384, %v381, %v383
    %v386 = vsel %vm384, %v379, %v381
    %v387 = vsel %vm384, %v377, %v379
    %v388 = vsel %vm384, %v383, %v377
    %v389 = vlaneseq
    %v390 = vshrl.u32 %v389, 7
    %v391 = vsub.s32 1, %v390
    %v392 = vrot.slane %v55, %v391
    %v393 = vlaneseq
    %v394 = vshrl.u32 %v393, 7
    %v395 = vsub.s32 1, %v394
    %v396 = vrot.slane %v56, %v395
    %v397 = vlaneseq
    %v398 = vshrl.u32 %v397, 7
    %v399 = vsub.s32 1, %v398
    %v400 = vrot.slane %v57, %v399
    %v401 = vlaneseq
    %v402 = vshrl.u32 %v401, 7
    %v403 = vsub.s32 1, %v402
    %v404 = vrot.slane %v58, %v403
    %v405 = vmul.f32 %v388, %v392
    %v406 = vmul.f32 %v387, %v396
    %v407 = vmul.f32 %v386, %v400
    %v408 = vmul.f32 %v385, %v404
    %409 = vset.pattern.permute.xlu0 5
    %410 = vperm.xlu0 %409, %v54
    %v411 = vpop.permute.xlu0 %410
    %v413 = vmul.f32 %v405, %v411
    %v414 = vmul.f32 %v406, %v411
    %v415 = vmul.f32 %v407, %v411
    %v416 = vmul.f32 %v408, %v411
    %v417 = vadd.f32 %v372, %v413
    %v418 = vadd.f32 %v373, %v414
    %v419 = vadd.f32 %v374, %v415
    %v420 = vadd.f32 %v375, %v416
    %421 = vrot.lane.b32.xlu0 %v258, 15
    %v422 = vpop.permute.xlu0 %421
    %423 = vrot.lane.b32.xlu0 %v260, 15
    %v424 = vpop.permute.xlu0 %423
    %425 = vrot.lane.b32.xlu0 %v329, 15
    %v426 = vpop.permute.xlu0 %425
    %427 = vrot.lane.b32.xlu0 %v331, 15
    %v428 = vpop.permute.xlu0 %427
    %vm429 = vcmp.lt.s32.totalorder %v342, 15
    %v430 = vsel %vm429, %v426, %v428
    %v431 = vsel %vm429, %v424, %v426
    %v432 = vsel %vm429, %v422, %v424
    %v433 = vsel %vm429, %v428, %v422
    %v434 = vlaneseq
    %v435 = vshrl.u32 %v434, 7
    %v436 = vsub.s32 2, %v435
    %v437 = vrot.slane %v55, %v436
    %v438 = vlaneseq
    %v439 = vshrl.u32 %v438, 7
    %v440 = vsub.s32 2, %v439
    %v441 = vrot.slane %v56, %v440
    %v442 = vlaneseq
    %v443 = vshrl.u32 %v442, 7
    %v444 = vsub.s32 2, %v443
    %v445 = vrot.slane %v57, %v444
    %v446 = vlaneseq
    %v447 = vshrl.u32 %v446, 7
    %v448 = vsub.s32 2, %v447
    %v449 = vrot.slane %v58, %v448
    %v450 = vmul.f32 %v433, %v437
    %v451 = vmul.f32 %v432, %v441
    %v452 = vmul.f32 %v431, %v445
    %v453 = vmul.f32 %v430, %v449
    %454 = vset.pattern.permute.xlu0 6
    %455 = vperm.xlu0 %454, %v54
    %v456 = vpop.permute.xlu0 %455
    %v458 = vmul.f32 %v450, %v456
    %v459 = vmul.f32 %v451, %v456
    %v460 = vmul.f32 %v452, %v456
    %v461 = vmul.f32 %v453, %v456
    %v462 = vadd.f32 %v417, %v458
    %v463 = vadd.f32 %v418, %v459
    %v464 = vadd.f32 %v419, %v460
    %v465 = vadd.f32 %v420, %v461
    %466 = vrot.lane.b32.xlu0 %v258, 1
    %v467 = vpop.permute.xlu0 %466
    %468 = vrot.lane.b32.xlu0 %v260, 1
    %v469 = vpop.permute.xlu0 %468
    %470 = vrot.lane.b32.xlu0 %v329, 1
    %v471 = vpop.permute.xlu0 %470
    %472 = vrot.lane.b32.xlu0 %v331, 1
    %v473 = vpop.permute.xlu0 %472
    %vm474 = vcmp.lt.s32.totalorder %v342, 1
    %v475 = vsel %vm474, %v471, %v473
    %v476 = vsel %vm474, %v469, %v471
    %v477 = vsel %vm474, %v467, %v469
    %v478 = vsel %vm474, %v473, %v467
    %v479 = vlaneseq
    %v480 = vshrl.u32 %v479, 7
    %v481 = vsub.s32 3, %v480
    %v482 = vrot.slane %v55, %v481
    %v483 = vlaneseq
    %v484 = vshrl.u32 %v483, 7
    %v485 = vsub.s32 3, %v484
    %v486 = vrot.slane %v56, %v485
    %v487 = vlaneseq
    %v488 = vshrl.u32 %v487, 7
    %v489 = vsub.s32 3, %v488
    %v490 = vrot.slane %v57, %v489
    %v491 = vlaneseq
    %v492 = vshrl.u32 %v491, 7
    %v493 = vsub.s32 3, %v492
    %v494 = vrot.slane %v58, %v493
    %v495 = vmul.f32 %v478, %v482
    %v496 = vmul.f32 %v477, %v486
    %v497 = vmul.f32 %v476, %v490
    %v498 = vmul.f32 %v475, %v494
    %499 = vset.pattern.permute.xlu0 7
    %500 = vperm.xlu0 %499, %v54
    %v501 = vpop.permute.xlu0 %500
    %v503 = vmul.f32 %v495, %v501
    %v504 = vmul.f32 %v496, %v501
    %v505 = vmul.f32 %v497, %v501
    %v506 = vmul.f32 %v498, %v501
    %v507 = vadd.f32 %v462, %v503
    %v508 = vadd.f32 %v463, %v504
    %v509 = vadd.f32 %v464, %v505
    %v510 = vadd.f32 %v465, %v506
    %511 = vset.pattern.permute.xlu0 8
    %512 = vperm.xlu0 %511, %v54
    %v513 = vpop.permute.xlu0 %512
    %v515 = vmul.f32 %v258, %v513
    %v516 = vmul.f32 %v260, %v513
    %v517 = vmul.f32 %v329, %v513
    %v518 = vmul.f32 %v331, %v513
    %v519 = vadd.f32 %v507, %v515
    %v520 = vadd.f32 %v508, %v516
    %v521 = vadd.f32 %v509, %v517
    %v522 = vadd.f32 %v510, %v518
    %523 = vrot.lane.b32.xlu0 %v258, 127
    %v524 = vpop.permute.xlu0 %523
    %525 = vrot.lane.b32.xlu0 %v260, 127
    %v526 = vpop.permute.xlu0 %525
    %527 = vrot.lane.b32.xlu0 %v329, 127
    %v528 = vpop.permute.xlu0 %527
    %529 = vrot.lane.b32.xlu0 %v331, 127
    %v530 = vpop.permute.xlu0 %529
    %vm531 = vcmp.lt.s32.totalorder %v342, 127
    %v532 = vsel %vm531, %v528, %v530
    %v533 = vsel %vm531, %v526, %v528
    %v534 = vsel %vm531, %v524, %v526
    %v535 = vsel %vm531, %v530, %v524
    %v536 = vlaneseq
    %v537 = vshrl.u32 %v536, 7
    %v538 = vsub.s32 5, %v537
    %v539 = vrot.slane %v55, %v538
    %v540 = vlaneseq
    %v541 = vshrl.u32 %v540, 7
    %v542 = vsub.s32 5, %v541
    %v543 = vrot.slane %v56, %v542
    %v544 = vlaneseq
    %v545 = vshrl.u32 %v544, 7
    %v546 = vsub.s32 5, %v545
    %v547 = vrot.slane %v57, %v546
    %v548 = vlaneseq
    %v549 = vshrl.u32 %v548, 7
    %v550 = vsub.s32 5, %v549
    %v551 = vrot.slane %v58, %v550
    %v552 = vmul.f32 %v534, %v539
    %v553 = vmul.f32 %v533, %v543
    %v554 = vmul.f32 %v532, %v547
    %v555 = vmul.f32 %v535, %v551
    %556 = vset.pattern.permute.xlu0 9
    %557 = vperm.xlu0 %556, %v54
    %v558 = vpop.permute.xlu0 %557
    %v560 = vmul.f32 %v552, %v558
    %v561 = vmul.f32 %v553, %v558
    %v562 = vmul.f32 %v554, %v558
    %v563 = vmul.f32 %v555, %v558
    %v564 = vadd.f32 %v519, %v560
    %v565 = vadd.f32 %v520, %v561
    %v566 = vadd.f32 %v521, %v562
    %v567 = vadd.f32 %v522, %v563
    %568 = vrot.lane.b32.xlu0 %v258, 113
    %v569 = vpop.permute.xlu0 %568
    %570 = vrot.lane.b32.xlu0 %v260, 113
    %v571 = vpop.permute.xlu0 %570
    %572 = vrot.lane.b32.xlu0 %v329, 113
    %v573 = vpop.permute.xlu0 %572
    %574 = vrot.lane.b32.xlu0 %v331, 113
    %v575 = vpop.permute.xlu0 %574
    %vm576 = vcmp.lt.s32.totalorder %v342, 113
    %v577 = vsel %vm576, %v573, %v575
    %v578 = vsel %vm576, %v571, %v573
    %v579 = vsel %vm576, %v569, %v571
    %v580 = vsel %vm576, %v575, %v569
    %v581 = vlaneseq
    %v582 = vshrl.u32 %v581, 7
    %v583 = vsub.s32 6, %v582
    %v584 = vrot.slane %v55, %v583
    %v585 = vlaneseq
    %v586 = vshrl.u32 %v585, 7
    %v587 = vsub.s32 6, %v586
    %v588 = vrot.slane %v56, %v587
    %v589 = vlaneseq
    %v590 = vshrl.u32 %v589, 7
    %v591 = vsub.s32 6, %v590
    %v592 = vrot.slane %v57, %v591
    %v593 = vlaneseq
    %v594 = vshrl.u32 %v593, 7
    %v595 = vsub.s32 6, %v594
    %v596 = vrot.slane %v58, %v595
    %v597 = vmul.f32 %v579, %v584
    %v598 = vmul.f32 %v578, %v588
    %v599 = vmul.f32 %v577, %v592
    %v600 = vmul.f32 %v580, %v596
    %601 = vset.pattern.permute.xlu0 10
    %602 = vperm.xlu0 %601, %v54
    %v603 = vpop.permute.xlu0 %602
    %v605 = vmul.f32 %v597, %v603
    %v606 = vmul.f32 %v598, %v603
    %v607 = vmul.f32 %v599, %v603
    %v608 = vmul.f32 %v600, %v603
    %v609 = vadd.f32 %v564, %v605
    %v610 = vadd.f32 %v565, %v606
    %v611 = vadd.f32 %v566, %v607
    %v612 = vadd.f32 %v567, %v608
    %613 = vrot.lane.b32.xlu0 %v258, 112
    %v614 = vpop.permute.xlu0 %613
    %615 = vrot.lane.b32.xlu0 %v260, 112
    %v616 = vpop.permute.xlu0 %615
    %617 = vrot.lane.b32.xlu0 %v329, 112
    %v618 = vpop.permute.xlu0 %617
    %619 = vrot.lane.b32.xlu0 %v331, 112
    %v620 = vpop.permute.xlu0 %619
    %vm621 = vcmp.lt.s32.totalorder %v342, 112
    %v622 = vsel %vm621, %v618, %v620
    %v623 = vsel %vm621, %v616, %v618
    %v624 = vsel %vm621, %v614, %v616
    %v625 = vsel %vm621, %v620, %v614
    %v626 = vlaneseq
    %v627 = vshrl.u32 %v626, 7
    %v628 = vsub.s32 7, %v627
    %v629 = vrot.slane %v55, %v628
    %v630 = vlaneseq
    %v631 = vshrl.u32 %v630, 7
    %v632 = vsub.s32 7, %v631
    %v633 = vrot.slane %v56, %v632
    %v634 = vlaneseq
    %v635 = vshrl.u32 %v634, 7
    %v636 = vsub.s32 7, %v635
    %v637 = vrot.slane %v57, %v636
    %v638 = vlaneseq
    %v639 = vshrl.u32 %v638, 7
    %v640 = vsub.s32 7, %v639
    %v641 = vrot.slane %v58, %v640
    %v642 = vmul.f32 %v624, %v629
    %v643 = vmul.f32 %v623, %v633
    %v644 = vmul.f32 %v622, %v637
    %v645 = vmul.f32 %v625, %v641
    %646 = vset.pattern.permute.xlu0 11
    %647 = vperm.xlu0 %646, %v54
    %v648 = vpop.permute.xlu0 %647
    %v650 = vmul.f32 %v642, %v648
    %v651 = vmul.f32 %v643, %v648
    %v652 = vmul.f32 %v644, %v648
    %v653 = vmul.f32 %v645, %v648
    %v654 = vadd.f32 %v609, %v650
    %v655 = vadd.f32 %v610, %v651
    %v656 = vadd.f32 %v611, %v652
    %v657 = vadd.f32 %v612, %v653
    %658 = vrot.lane.b32.xlu0 %v258, 111
    %v659 = vpop.permute.xlu0 %658
    %660 = vrot.lane.b32.xlu0 %v260, 111
    %v661 = vpop.permute.xlu0 %660
    %662 = vrot.lane.b32.xlu0 %v329, 111
    %v663 = vpop.permute.xlu0 %662
    %664 = vrot.lane.b32.xlu0 %v331, 111
    %v665 = vpop.permute.xlu0 %664
    %vm666 = vcmp.lt.s32.totalorder %v342, 111
    %v667 = vsel %vm666, %v663, %v665
    %v668 = vsel %vm666, %v661, %v663
    %v669 = vsel %vm666, %v659, %v661
    %v670 = vsel %vm666, %v665, %v659
    %v671 = vlaneseq
    %v672 = vshrl.u32 %v671, 7
    %v673 = vsub.s32 0, %v672
    %v674 = vrot.slane %v59, %v673
    %v675 = vlaneseq
    %v676 = vshrl.u32 %v675, 7
    %v677 = vsub.s32 0, %v676
    %v678 = vrot.slane %v60, %v677
    %v679 = vlaneseq
    %v680 = vshrl.u32 %v679, 7
    %v681 = vsub.s32 0, %v680
    %v682 = vrot.slane %v61, %v681
    %v683 = vlaneseq
    %v684 = vshrl.u32 %v683, 7
    %v685 = vsub.s32 0, %v684
    %v686 = vrot.slane %v62, %v685
    %v687 = vmul.f32 %v669, %v674
    %v688 = vmul.f32 %v668, %v678
    %v689 = vmul.f32 %v667, %v682
    %v690 = vmul.f32 %v670, %v686
    %691 = vset.pattern.permute.xlu0 12
    %692 = vperm.xlu0 %691, %v54
    %v693 = vpop.permute.xlu0 %692
    %v695 = vmul.f32 %v687, %v693
    %v696 = vmul.f32 %v688, %v693
    %v697 = vmul.f32 %v689, %v693
    %v698 = vmul.f32 %v690, %v693
    %v699 = vadd.f32 %v654, %v695
    %v700 = vadd.f32 %v655, %v696
    %v701 = vadd.f32 %v656, %v697
    %v702 = vadd.f32 %v657, %v698
    %703 = vset.pattern.permute.xlu0 22
    %704 = vperm.xlu0 %703, %v54
    %v705 = vpop.permute.xlu0 %704
    %v707 = vadd.f32 %v699, %v705
    %v708 = vadd.f32 %v700, %v705
    %v709 = vadd.f32 %v701, %v705
    %v710 = vadd.f32 %v702, %v705
    %v715 = vrot.slane %v707, 4
    %v716 = vrot.slane %v708, 4
    %v717 = vrot.slane %v709, 4
    %v718 = vrot.slane %v710, 4
    %v723 = vmul.f32 %v707, %v715
    %v724 = vmul.f32 %v708, %v716
    %v725 = vmul.f32 %v709, %v717
    %v726 = vmul.f32 %v710, %v718
    %v727 = vmul.f32 %v723, %v723
    %v728 = vmul.f32 %v724, %v724
    %v729 = vmul.f32 %v725, %v725
    %v730 = vmul.f32 %v726, %v726
    %v731 = vmul.f32 %v727, %v723
    %v732 = vmul.f32 %v728, %v724
    %v733 = vmul.f32 %v729, %v725
    %v734 = vmul.f32 %v730, %v726
    %v735 = vmul.f32 %v731, 0.044715
    %v736 = vmul.f32 %v732, 0.044715
    %v737 = vmul.f32 %v733, 0.044715
    %v738 = vmul.f32 %v734, 0.044715
    %v739 = vadd.f32 %v723, %v735
    %v740 = vadd.f32 %v724, %v736
    %v741 = vadd.f32 %v725, %v737
    %v742 = vadd.f32 %v726, %v738
    %v743 = vmul.f32 %v739, 0.7978846
    %v744 = vmul.f32 %v740, 0.7978846
    %v745 = vmul.f32 %v741, 0.7978846
    %v746 = vmul.f32 %v742, 0.7978846
    %v747 = vmul.f32 %v723, 0.5
    %v748 = vmul.f32 %v724, 0.5
    %v749 = vmul.f32 %v725, 0.5
    %v750 = vmul.f32 %v726, 0.5
    %v751 = vtanh.pop %v743
    %v752 = vtanh.pop %v744
    %v753 = vtanh.pop %v745
    %v754 = vtanh.pop %v746
    %v755 = vadd.f32 %v751, 1.0
    %v756 = vadd.f32 %v752, 1.0
    %v757 = vadd.f32 %v753, 1.0
    %v758 = vadd.f32 %v754, 1.0
    %v759 = vmul.f32 %v747, %v755
    %v760 = vmul.f32 %v748, %v756
    %v761 = vmul.f32 %v749, %v757
    %v762 = vmul.f32 %v750, %v758
    %763 = vset.pattern.permute.xlu0 25
    %764 = vperm.xlu0 %763, %v54
    %v765 = vpop.permute.xlu0 %764
    %v767 = vmul.f32 %v759, %v765
    %v768 = vmul.f32 %v760, %v765
    %v769 = vmul.f32 %v761, %v765
    %v770 = vmul.f32 %v762, %v765
    %v775 = vcombine.low %v767, %v768
    %v776 = vcombine.low %v769, %v770
    %v779 = vadd.f32 %v52, %v775
    %v780 = vadd.f32 %v53, %v776
    %v783 = vcombine.high %v779, %v779
    %v784 = vcombine.high %v780, %v780
    %v787 = vsel %vm69, %v779, 0.0
    %v788 = vrot.slane %v787, 4
    %v789 = vadd.f32 %v787, %v788
    %v790 = vrot.slane %v789, 2
    %v791 = vadd.f32 %v789, %v790
    %v792 = vrot.slane %v791, 1
    %v793 = vadd.f32 %v791, %v792
    %v794 = vsel %vm69, %v783, 0.0
    %v795 = vrot.slane %v794, 4
    %v796 = vadd.f32 %v794, %v795
    %v797 = vrot.slane %v796, 2
    %v798 = vadd.f32 %v796, %v797
    %v799 = vrot.slane %v798, 1
    %v800 = vadd.f32 %v798, %v799
    %v801 = vsel %vm69, %v780, 0.0
    %v802 = vrot.slane %v801, 4
    %v803 = vadd.f32 %v801, %v802
    %v804 = vrot.slane %v803, 2
    %v805 = vadd.f32 %v803, %v804
    %v806 = vrot.slane %v805, 1
    %v807 = vadd.f32 %v805, %v806
    %v808 = vsel %vm69, %v784, 0.0
    %v809 = vrot.slane %v808, 4
    %v810 = vadd.f32 %v808, %v809
    %v811 = vrot.slane %v810, 2
    %v812 = vadd.f32 %v810, %v811
    %v813 = vrot.slane %v812, 1
    %v814 = vadd.f32 %v812, %v813
    %v815 = vmul.f32 %v793, %v98
    %v816 = vmul.f32 %v800, %v98
    %v817 = vmul.f32 %v807, %v98
    %v818 = vmul.f32 %v814, %v98
    %v823 = vcombine.low %v815, %v816
    %v824 = vcombine.low %v817, %v818
    %v827 = vsub.f32 %v779, %v823
    %v828 = vsub.f32 %v780, %v824
    %v829 = vmul.f32 %v827, %v827
    %v830 = vmul.f32 %v828, %v828
    %v833 = vcombine.high %v829, %v829
    %v834 = vcombine.high %v830, %v830
    %v837 = vsel %vm69, %v829, 0.0
    %v838 = vrot.slane %v837, 4
    %v839 = vadd.f32 %v837, %v838
    %v840 = vrot.slane %v839, 2
    %v841 = vadd.f32 %v839, %v840
    %v842 = vrot.slane %v841, 1
    %v843 = vadd.f32 %v841, %v842
    %v844 = vsel %vm69, %v833, 0.0
    %v845 = vrot.slane %v844, 4
    %v846 = vadd.f32 %v844, %v845
    %v847 = vrot.slane %v846, 2
    %v848 = vadd.f32 %v846, %v847
    %v849 = vrot.slane %v848, 1
    %v850 = vadd.f32 %v848, %v849
    %v851 = vsel %vm69, %v830, 0.0
    %v852 = vrot.slane %v851, 4
    %v853 = vadd.f32 %v851, %v852
    %v854 = vrot.slane %v853, 2
    %v855 = vadd.f32 %v853, %v854
    %v856 = vrot.slane %v855, 1
    %v857 = vadd.f32 %v855, %v856
    %v858 = vsel %vm69, %v834, 0.0
    %v859 = vrot.slane %v858, 4
    %v860 = vadd.f32 %v858, %v859
    %v861 = vrot.slane %v860, 2
    %v862 = vadd.f32 %v860, %v861
    %v863 = vrot.slane %v862, 1
    %v864 = vadd.f32 %v862, %v863
    %v865 = vmul.f32 %v843, %v98
    %v866 = vmul.f32 %v850, %v98
    %v867 = vmul.f32 %v857, %v98
    %v868 = vmul.f32 %v864, %v98
    %v869 = vadd.f32 %v865, 1e-06
    %v870 = vadd.f32 %v866, 1e-06
    %v871 = vadd.f32 %v867, 1e-06
    %v872 = vadd.f32 %v868, 1e-06
    %v873 = vrsqrt.pop %v869
    %v874 = vrsqrt.pop %v870
    %v875 = vrsqrt.pop %v871
    %v876 = vrsqrt.pop %v872
    %v881 = vcombine.low %v873, %v874
    %v882 = vcombine.low %v875, %v876
    %v885 = vmul.f32 %v827, %v881
    %v886 = vmul.f32 %v828, %v882
    %887 = vset.pattern.permute.xlu0 23
    %888 = vperm.xlu0 %887, %v54
    %v889 = vpop.permute.xlu0 %888
    %891 = vrot.lane.b32.xlu0 %v54, 115
    %v892 = vpop.permute.xlu0 %891
    %v895 = vcombine.high %v885, %v885
    %v896 = vcombine.high %v886, %v886
    %v897 = vsel %vm180, %v892, 0
    %v899 = vsel %vm69, %v885, 0
    %v901 = vsel %vm69, %v895, 0
    %v903 = vsel %vm69, %v886, 0
    %v905 = vsel %vm69, %v896, 0
    %907 = vmatprep.subr.mxu0 %v901
    %908 = vmatpush1.msra.mxu0 %v899
    %909 = vmatprep.subr.mxu0 0.0
    %910 = vmatpush1.msra.mxu0 0.0
    %911 = vmatprep.subr.mxu0 0.0
    %912 = vmatpush1.msra.mxu0 0.0
    %913 = vmatprep.subr.mxu0 0.0
    %914 = vmatpush1.msra.mxu0 0.0
    %915 = vmatprep.subr.mxu0 0.0
    %916 = vmatpush1.msra.mxu0 0.0
    %917 = vmatprep.subr.mxu0 0.0
    %918 = vmatpush1.msra.mxu0 0.0
    %919 = vmatprep.subr.mxu0 0.0
    %920 = vmatpush1.msra.mxu0 0.0
    %921 = vmatprep.subr.mxu0 0.0
    %922 = vmatpush1.msra.mxu0 0.0
    %923 = vmatprep.subr.mxu0 0.0
    %924 = vmatpush1.msra.mxu0 0.0
    %925 = vmatprep.subr.mxu0 0.0
    %926 = vmatpush1.msra.mxu0 0.0
    %927 = vmatprep.subr.mxu0 0.0
    %928 = vmatpush1.msra.mxu0 0.0
    %929 = vmatprep.subr.mxu0 0.0
    %930 = vmatpush1.msra.mxu0 0.0
    %931 = vmatprep.subr.mxu0 0.0
    %932 = vmatpush1.msra.mxu0 0.0
    %933 = vmatprep.subr.mxu0 0.0
    %934 = vmatpush1.msra.mxu0 0.0
    %935 = vmatprep.subr.mxu0 0.0
    %936 = vmatpush1.msra.mxu0 0.0
    %937 = vmatprep.subr.mxu0 0.0
    %938 = vmatpush1.msra.mxu0 0.0
    %939 = vmatprep.subr.mxu0 0.0
    %940 = vmatpush1.msra.mxu0 0.0
    %941 = vmatprep.subr.mxu0 0.0
    %942 = vmatpush1.msra.mxu0 0.0
    %943 = vmatprep.subr.mxu0 0.0
    %944 = vmatpush1.msra.mxu0 0.0
    %945 = vmatprep.subr.mxu0 0.0
    %946 = vmatpush1.msra.mxu0 0.0
    %947 = vmatprep.subr.mxu0 0.0
    %948 = vmatpush1.msra.mxu0 0.0
    %949 = vmatprep.subr.mxu0 0.0
    %950 = vmatpush1.msra.mxu0 0.0
    %951 = vmatprep.subr.mxu0 0.0
    %952 = vmatpush1.msra.mxu0 0.0
    %953 = vmatprep.subr.mxu0 0.0
    %954 = vmatpush1.msra.mxu0 0.0
    %955 = vmatprep.subr.mxu0 0.0
    %956 = vmatpush1.msra.mxu0 0.0
    %957 = vmatprep.subr.mxu0 0.0
    %958 = vmatpush1.msra.mxu0 0.0
    %959 = vmatprep.subr.mxu0 0.0
    %960 = vmatpush1.msra.mxu0 0.0
    %961 = vmatprep.subr.mxu0 0.0
    %962 = vmatpush1.msra.mxu0 0.0
    %963 = vmatprep.subr.mxu0 0.0
    %964 = vmatpush1.msra.mxu0 0.0
    %965 = vmatprep.subr.mxu0 0.0
    %966 = vmatpush1.msra.mxu0 0.0
    %967 = vmatprep.subr.mxu0 0.0
    %968 = vmatpush1.msra.mxu0 0.0
    %969 = vmatprep.subr.mxu0 0.0
    %970 = vmatpush1.msra.mxu0 0.0
    %971 = vmatprep.mubr.f32.mxu0 0.0
    %972 = vmatmul.mubr.f32.gmra.mrb[0].mxu0 %v897
    %v973 = vpop.f32.mrb[0].mxu0
    %v974 = vadd.f32 %v889, %v973
    %v975 = vpop.f32.mrb[0].mxu0
    %v976 = vadd.f32 %v889, %v975
    %977 = vdwg.mxu0
    %978 = vmatprep.subr.mxu0 %v905
    %979 = vmatpush1.msra.mxu0 %v903
    %980 = vmatprep.subr.mxu0 0.0
    %981 = vmatpush1.msra.mxu0 0.0
    %982 = vmatprep.subr.mxu0 0.0
    %983 = vmatpush1.msra.mxu0 0.0
    %984 = vmatprep.subr.mxu0 0.0
    %985 = vmatpush1.msra.mxu0 0.0
    %986 = vmatprep.subr.mxu0 0.0
    %987 = vmatpush1.msra.mxu0 0.0
    %988 = vmatprep.subr.mxu0 0.0
    %989 = vmatpush1.msra.mxu0 0.0
    %990 = vmatprep.subr.mxu0 0.0
    %991 = vmatpush1.msra.mxu0 0.0
    %992 = vmatprep.subr.mxu0 0.0
    %993 = vmatpush1.msra.mxu0 0.0
    %994 = vmatprep.subr.mxu0 0.0
    %995 = vmatpush1.msra.mxu0 0.0
    %996 = vmatprep.subr.mxu0 0.0
    %997 = vmatpush1.msra.mxu0 0.0
    %998 = vmatprep.subr.mxu0 0.0
    %999 = vmatpush1.msra.mxu0 0.0
    %1000 = vmatprep.subr.mxu0 0.0
    %1001 = vmatpush1.msra.mxu0 0.0
    %1002 = vmatprep.subr.mxu0 0.0
    %1003 = vmatpush1.msra.mxu0 0.0
    %1004 = vmatprep.subr.mxu0 0.0
    %1005 = vmatpush1.msra.mxu0 0.0
    %1006 = vmatprep.subr.mxu0 0.0
    %1007 = vmatpush1.msra.mxu0 0.0
    %1008 = vmatprep.subr.mxu0 0.0
    %1009 = vmatpush1.msra.mxu0 0.0
    %1010 = vmatprep.subr.mxu0 0.0
    %1011 = vmatpush1.msra.mxu0 0.0
    %1012 = vmatprep.subr.mxu0 0.0
    %1013 = vmatpush1.msra.mxu0 0.0
    %1014 = vmatprep.subr.mxu0 0.0
    %1015 = vmatpush1.msra.mxu0 0.0
    %1016 = vmatprep.subr.mxu0 0.0
    %1017 = vmatpush1.msra.mxu0 0.0
    %1018 = vmatprep.subr.mxu0 0.0
    %1019 = vmatpush1.msra.mxu0 0.0
    %1020 = vmatprep.subr.mxu0 0.0
    %1021 = vmatpush1.msra.mxu0 0.0
    %1022 = vmatprep.subr.mxu0 0.0
    %1023 = vmatpush1.msra.mxu0 0.0
    %1024 = vmatprep.subr.mxu0 0.0
    %1025 = vmatpush1.msra.mxu0 0.0
    %1026 = vmatprep.subr.mxu0 0.0
    %1027 = vmatpush1.msra.mxu0 0.0
    %1028 = vmatprep.subr.mxu0 0.0
    %1029 = vmatpush1.msra.mxu0 0.0
    %1030 = vmatprep.subr.mxu0 0.0
    %1031 = vmatpush1.msra.mxu0 0.0
    %1032 = vmatprep.subr.mxu0 0.0
    %1033 = vmatpush1.msra.mxu0 0.0
    %1034 = vmatprep.subr.mxu0 0.0
    %1035 = vmatpush1.msra.mxu0 0.0
    %1036 = vmatprep.subr.mxu0 0.0
    %1037 = vmatpush1.msra.mxu0 0.0
    %1038 = vmatprep.subr.mxu0 0.0
    %1039 = vmatpush1.msra.mxu0 0.0
    %1040 = vmatprep.subr.mxu0 0.0
    %1041 = vmatpush1.msra.mxu0 0.0
    %1042 = vmatprep.mubr.f32.mxu0 0.0
    %1043 = vmatmul.mubr.f32.gmra.mrb[0].mxu0 %v897
    %v1044 = vpop.f32.mrb[0].mxu0
    %v1045 = vadd.f32 %v889, %v1044
    %v1046 = vpop.f32.mrb[0].mxu0
    %v1047 = vadd.f32 %v889, %v1046
    %1048 = vdwg.mxu0
    %v1049 = vmul.f32 %v974, %v974
    %v1050 = vmul.f32 %v976, %v976
    %v1051 = vmul.f32 %v1045, %v1045
    %v1052 = vmul.f32 %v1047, %v1047
    %v1053 = vmul.f32 %v1049, %v974
    %v1054 = vmul.f32 %v1050, %v976
    %v1055 = vmul.f32 %v1051, %v1045
    %v1056 = vmul.f32 %v1052, %v1047
    %v1057 = vmul.f32 %v1053, 0.044715
    %v1058 = vmul.f32 %v1054, 0.044715
    %v1059 = vmul.f32 %v1055, 0.044715
    %v1060 = vmul.f32 %v1056, 0.044715
    %v1061 = vadd.f32 %v974, %v1057
    %v1062 = vadd.f32 %v976, %v1058
    %v1063 = vadd.f32 %v1045, %v1059
    %v1064 = vadd.f32 %v1047, %v1060
    %v1065 = vmul.f32 %v1061, 0.7978846
    %v1066 = vmul.f32 %v1062, 0.7978846
    %v1067 = vmul.f32 %v1063, 0.7978846
    %v1068 = vmul.f32 %v1064, 0.7978846
    %v1069 = vmul.f32 %v974, 0.5
    %v1070 = vmul.f32 %v976, 0.5
    %v1071 = vmul.f32 %v1045, 0.5
    %v1072 = vmul.f32 %v1047, 0.5
    %v1073 = vtanh.pop %v1065
    %v1074 = vtanh.pop %v1066
    %v1075 = vtanh.pop %v1067
    %v1076 = vtanh.pop %v1068
    %v1077 = vadd.f32 %v1073, 1.0
    %v1078 = vadd.f32 %v1074, 1.0
    %v1079 = vadd.f32 %v1075, 1.0
    %v1080 = vadd.f32 %v1076, 1.0
    %v1081 = vmul.f32 %v1069, %v1077
    %v1082 = vmul.f32 %v1070, %v1078
    %v1083 = vmul.f32 %v1071, %v1079
    %v1084 = vmul.f32 %v1072, %v1080
    %1085 = vset.pattern.permute.xlu0 24
    %1086 = vperm.xlu0 %1085, %v54
    %v1087 = vpop.permute.xlu0 %1086
    %1089 = vrot.lane.b32.xlu0 %v54, 111
    %v1090 = vpop.permute.xlu0 %1089
    %1092 = vxpose.xlu0.b32.start [1/16] %v1090, 128
    %1093 = vxpose.xlu0.b32.cont [2/16] 0.0, 128
    %1094 = vxpose.xlu0.b32.cont [3/16] 0.0, 128
    %1095 = vxpose.xlu0.b32.cont [4/16] 0.0, 128
    %1096 = vxpose.xlu0.b32.cont [5/16] 0.0, 128
    %1097 = vxpose.xlu0.b32.cont [6/16] 0.0, 128
    %1098 = vxpose.xlu0.b32.cont [7/16] 0.0, 128
    %1099 = vxpose.xlu0.b32.cont [8/16] 0.0, 128
    %1100 = vxpose.xlu0.b32.cont [9/16] 0.0, 128
    %1101 = vxpose.xlu0.b32.cont [10/16] 0.0, 128
    %1102 = vxpose.xlu0.b32.cont [11/16] 0.0, 128
    %1103 = vxpose.xlu0.b32.cont [12/16] 0.0, 128
    %1104 = vxpose.xlu0.b32.cont [13/16] 0.0, 128
    %1105 = vxpose.xlu0.b32.cont [14/16] 0.0, 128
    %1106 = vxpose.xlu0.b32.cont [15/16] 0.0, 128
    %1107 = vxpose.xlu0.b32.end [16/16] 0.0, 128
    %v1108 = vpop.trf.xlu0
    %v1109 = vpop.trf.xlu0
    %v1110 = vpop.trf.xlu0
    %v1111 = vpop.trf.xlu0
    %v1112 = vpop.trf.xlu0
    %v1113 = vpop.trf.xlu0
    %v1114 = vpop.trf.xlu0
    %v1115 = vpop.trf.xlu0
    %v1116 = vpop.trf.xlu0
    %v1117 = vpop.trf.xlu0
    %v1118 = vpop.trf.xlu0
    %v1119 = vpop.trf.xlu0
    %v1120 = vpop.trf.xlu0
    %v1121 = vpop.trf.xlu0
    %v1122 = vpop.trf.xlu0
    %v1123 = vpop.trf.xlu0
    %vm1124 = vcmask 64512
    %v1126 = vsel %vm1124, %v1108, 0
    %1128 = vmatprep.subr.mxu0 %v1082
    %1129 = vmatpush1.msra.mxu0 %v1081
    %1130 = vmatprep.subr.mxu0 0.0
    %1131 = vmatpush1.msra.mxu0 0.0
    %1132 = vmatprep.subr.mxu0 0.0
    %1133 = vmatpush1.msra.mxu0 0.0
    %1134 = vmatprep.subr.mxu0 0.0
    %1135 = vmatpush1.msra.mxu0 0.0
    %1136 = vmatprep.subr.mxu0 0.0
    %1137 = vmatpush1.msra.mxu0 0.0
    %1138 = vmatprep.subr.mxu0 0.0
    %1139 = vmatpush1.msra.mxu0 0.0
    %1140 = vmatprep.subr.mxu0 0.0
    %1141 = vmatpush1.msra.mxu0 0.0
    %1142 = vmatprep.subr.mxu0 0.0
    %1143 = vmatpush1.msra.mxu0 0.0
    %1144 = vmatprep.subr.mxu0 0.0
    %1145 = vmatpush1.msra.mxu0 0.0
    %1146 = vmatprep.subr.mxu0 0.0
    %1147 = vmatpush1.msra.mxu0 0.0
    %1148 = vmatprep.subr.mxu0 0.0
    %1149 = vmatpush1.msra.mxu0 0.0
    %1150 = vmatprep.subr.mxu0 0.0
    %1151 = vmatpush1.msra.mxu0 0.0
    %1152 = vmatprep.subr.mxu0 0.0
    %1153 = vmatpush1.msra.mxu0 0.0
    %1154 = vmatprep.subr.mxu0 0.0
    %1155 = vmatpush1.msra.mxu0 0.0
    %1156 = vmatprep.subr.mxu0 0.0
    %1157 = vmatpush1.msra.mxu0 0.0
    %1158 = vmatprep.subr.mxu0 0.0
    %1159 = vmatpush1.msra.mxu0 0.0
    %1160 = vmatprep.subr.mxu0 0.0
    %1161 = vmatpush1.msra.mxu0 0.0
    %1162 = vmatprep.subr.mxu0 0.0
    %1163 = vmatpush1.msra.mxu0 0.0
    %1164 = vmatprep.subr.mxu0 0.0
    %1165 = vmatpush1.msra.mxu0 0.0
    %1166 = vmatprep.subr.mxu0 0.0
    %1167 = vmatpush1.msra.mxu0 0.0
    %1168 = vmatprep.subr.mxu0 0.0
    %1169 = vmatpush1.msra.mxu0 0.0
    %1170 = vmatprep.subr.mxu0 0.0
    %1171 = vmatpush1.msra.mxu0 0.0
    %1172 = vmatprep.subr.mxu0 0.0
    %1173 = vmatpush1.msra.mxu0 0.0
    %1174 = vmatprep.subr.mxu0 0.0
    %1175 = vmatpush1.msra.mxu0 0.0
    %1176 = vmatprep.subr.mxu0 0.0
    %1177 = vmatpush1.msra.mxu0 0.0
    %1178 = vmatprep.subr.mxu0 0.0
    %1179 = vmatpush1.msra.mxu0 0.0
    %1180 = vmatprep.subr.mxu0 0.0
    %1181 = vmatpush1.msra.mxu0 0.0
    %1182 = vmatprep.subr.mxu0 0.0
    %1183 = vmatpush1.msra.mxu0 0.0
    %1184 = vmatprep.subr.mxu0 0.0
    %1185 = vmatpush1.msra.mxu0 0.0
    %1186 = vmatprep.subr.mxu0 0.0
    %1187 = vmatpush1.msra.mxu0 0.0
    %1188 = vmatprep.subr.mxu0 0.0
    %1189 = vmatpush1.msra.mxu0 0.0
    %1190 = vmatprep.subr.mxu0 0.0
    %1191 = vmatpush1.msra.mxu0 0.0
    %1192 = vmatprep.mubr.f32.mxu0 0.0
    %1193 = vmatmul.mubr.f32.gmra.mrb[0].mxu0 %v1126
    %v1194 = vpop.f32.mrb[0].mxu0
    %v1195 = vadd.f32 %v1087, %v1194
    %v1196 = vpop.f32.mrb[0].mxu0
    %v1197 = vadd.f32 %v1087, %v1196
    %1198 = vdwg.mxu0
    %1199 = vmatprep.subr.mxu0 %v1084
    %1200 = vmatpush1.msra.mxu0 %v1083
    %1201 = vmatprep.subr.mxu0 0.0
    %1202 = vmatpush1.msra.mxu0 0.0
    %1203 = vmatprep.subr.mxu0 0.0
    %1204 = vmatpush1.msra.mxu0 0.0
    %1205 = vmatprep.subr.mxu0 0.0
    %1206 = vmatpush1.msra.mxu0 0.0
    %1207 = vmatprep.subr.mxu0 0.0
    %1208 = vmatpush1.msra.mxu0 0.0
    %1209 = vmatprep.subr.mxu0 0.0
    %1210 = vmatpush1.msra.mxu0 0.0
    %1211 = vmatprep.subr.mxu0 0.0
    %1212 = vmatpush1.msra.mxu0 0.0
    %1213 = vmatprep.subr.mxu0 0.0
    %1214 = vmatpush1.msra.mxu0 0.0
    %1215 = vmatprep.subr.mxu0 0.0
    %1216 = vmatpush1.msra.mxu0 0.0
    %1217 = vmatprep.subr.mxu0 0.0
    %1218 = vmatpush1.msra.mxu0 0.0
    %1219 = vmatprep.subr.mxu0 0.0
    %1220 = vmatpush1.msra.mxu0 0.0
    %1221 = vmatprep.subr.mxu0 0.0
    %1222 = vmatpush1.msra.mxu0 0.0
    %1223 = vmatprep.subr.mxu0 0.0
    %1224 = vmatpush1.msra.mxu0 0.0
    %1225 = vmatprep.subr.mxu0 0.0
    %1226 = vmatpush1.msra.mxu0 0.0
    %1227 = vmatprep.subr.mxu0 0.0
    %1228 = vmatpush1.msra.mxu0 0.0
    %1229 = vmatprep.subr.mxu0 0.0
    %1230 = vmatpush1.msra.mxu0 0.0
    %1231 = vmatprep.subr.mxu0 0.0
    %1232 = vmatpush1.msra.mxu0 0.0
    %1233 = vmatprep.subr.mxu0 0.0
    %1234 = vmatpush1.msra.mxu0 0.0
    %1235 = vmatprep.subr.mxu0 0.0
    %1236 = vmatpush1.msra.mxu0 0.0
    %1237 = vmatprep.subr.mxu0 0.0
    %1238 = vmatpush1.msra.mxu0 0.0
    %1239 = vmatprep.subr.mxu0 0.0
    %1240 = vmatpush1.msra.mxu0 0.0
    %1241 = vmatprep.subr.mxu0 0.0
    %1242 = vmatpush1.msra.mxu0 0.0
    %1243 = vmatprep.subr.mxu0 0.0
    %1244 = vmatpush1.msra.mxu0 0.0
    %1245 = vmatprep.subr.mxu0 0.0
    %1246 = vmatpush1.msra.mxu0 0.0
    %1247 = vmatprep.subr.mxu0 0.0
    %1248 = vmatpush1.msra.mxu0 0.0
    %1249 = vmatprep.subr.mxu0 0.0
    %1250 = vmatpush1.msra.mxu0 0.0
    %1251 = vmatprep.subr.mxu0 0.0
    %1252 = vmatpush1.msra.mxu0 0.0
    %1253 = vmatprep.subr.mxu0 0.0
    %1254 = vmatpush1.msra.mxu0 0.0
    %1255 = vmatprep.subr.mxu0 0.0
    %1256 = vmatpush1.msra.mxu0 0.0
    %1257 = vmatprep.subr.mxu0 0.0
    %1258 = vmatpush1.msra.mxu0 0.0
    %1259 = vmatprep.subr.mxu0 0.0
    %1260 = vmatpush1.msra.mxu0 0.0
    %1261 = vmatprep.subr.mxu0 0.0
    %1262 = vmatpush1.msra.mxu0 0.0
    %1263 = vmatprep.mubr.f32.mxu0 0.0
    %1264 = vmatmul.mubr.f32.gmra.mrb[0].mxu0 %v1126
    %v1265 = vpop.f32.mrb[0].mxu0
    %v1266 = vadd.f32 %v1087, %v1265
    %v1267 = vpop.f32.mrb[0].mxu0
    %v1268 = vadd.f32 %v1087, %v1267
    %1269 = vdwg.mxu0
    %v1274 = vcombine.low %v1195, %v1197
    %v1275 = vcombine.low %v1266, %v1268
    %v1278 = vadd.f32 %v779, %v1274
    %v1279 = vadd.f32 %v780, %v1275
    %1280 = vst [vmem:[#allocation8] sm:$0xff] %v1278
    %1281 = vst [vmem:[#allocation8 + $0x8] sm:$0xff] %v1279
    // Predicated region
    $region26: #{tpu_custom_call.1} parent=1 // pred_check
      _
    $region27: #{tpu_custom_call.1} parent=1 // pred_check_branch
      %1283 = sbr.rel (0) target = $region29
    $region28: #{tpu_custom_call.1} parent=1 // pred_region
      %s1285 = ssub.s32 256, 256
      %1286 = vsyncadd [#allocation4], %s1285
      %s1288 = sshll.u32 [#allocation8], 4
      %s1289 = int_to_ptr.vmem [resolvable:$true] %s1288
      %1291 = dma.vmem_to_hbm [thread:$0]  %s1289, 256, %s3, [#allocation4]
    $region29: #{tpu_custom_call.1} parent=1 // pred_fallthru
      _
    // Predicated region
    $region30: #{tpu_custom_call.1} parent=1 // pred_check
      _
    $region31: #{tpu_custom_call.1} parent=1 // pred_check_branch
      %1293 = sbr.rel (0) target = $region33
    $region32: #{tpu_custom_call.1} parent=1 // pred_region
      %1294 = dma.done [#allocation4], 256
    $region33: #{tpu_custom_call.1} parent=1 // pred_fallthru
      _
    %1295 = vsyncpa [#allocation3], 1
    %1296 = vsyncpa [#allocation6], 1
    %1297 = vsyncpa [#allocation4], 1

</llo_original>
